<compile_context>
chip_gen: v5e
topology: v5e:2x2
jax: 0.10.0
libtpu: 0.0.40
codegen_flags: <defaults>
</compile_context>

<pallas_src>
from collections import defaultdict
from functools import partial

import numpy as np
import jax
import jax.numpy as jnp
from jax.experimental import pallas as pl
from jax.experimental.pallas import tpu as pltpu


LANE = 128        # lane width (last-dim granularity)
SUB_BF16 = 16     # sublane granularity for bf16-packed operands
TM_MAX = 512      # max dst-row tile
TK_MAX = 2048     # max src/reduction tile (bf16 adj block 512x2048 = 2 MiB)
VMEM_LIMIT = 48 * 1024 * 1024   # <= v7x 64 MiB physical; fine on v5e/v6e


def _round_up(x, m):
    return ((x + m - 1) // m) * m


# ----------------------------------------------------------------------------
# Fused Pallas kernel: for one destination node type, accumulate over all
# relations r and all source tiles k:
#   out[i_tile] = sum_r ( A_r[i_tile, :] @ XW_r )        (bias added outside)
# ----------------------------------------------------------------------------
def _hetero_dst_kernel(nz_ref, adj_ref, xw_ref, o_ref, *, n_i, n_k):
    i = pl.program_id(0)
    r = pl.program_id(1)
    k = pl.program_id(2)

    # The output block is resident across (r, k): zero-init once per dst tile.
    @pl.when((r == 0) & (k == 0))
    def _():
        o_ref[...] = jnp.zeros_like(o_ref)

    # Block-sparsity gate: skip MXU work for all-zero adjacency tiles.
    nz = nz_ref[(r * n_i + i) * n_k + k]

    @pl.when(nz > 0)
    def _():
        o_ref[...] += jnp.dot(adj_ref[...], xw_ref[...],
                              preferred_element_type=jnp.float32)


def fused_dst_conv(nz_flat, adj_stack, xw_stack, tm, tk):
    """adj_stack: [R, Nd_pad, Ns_pad] bf16, xw_stack: [R, Ns_pad, Fo_pad] bf16,
       nz_flat: [R * (Nd_pad//tm) * (Ns_pad//tk)] int32 tile-nonzero table.
       Returns sum_r (A_r @ XW_r) as [Nd_pad, Fo_pad] f32."""
    n_rel, n_dst_pad, n_src_pad = adj_stack.shape
    f_out_pad = xw_stack.shape[-1]
    n_i = n_dst_pad // tm
    n_k = n_src_pad // tk
    grid = (n_i, n_rel, n_k)

    def adj_map(i, r, k, nz):
        # Redirect all-zero tiles to k-block 0: consecutive zero tiles keep the
        # same block index so their HBM fetch collapses (DMA skipped).
        z = nz[(r * n_i + i) * n_k + k]
        return (r, i, k * z)

    def xw_map(i, r, k, nz):
        z = nz[(r * n_i + i) * n_k + k]
        return (r, k * z, 0)

    return pl.pallas_call(
        partial(_hetero_dst_kernel, n_i=n_i, n_k=n_k),
        out_shape=jax.ShapeDtypeStruct((n_dst_pad, f_out_pad), jnp.float32),
        grid_spec=pltpu.PrefetchScalarGridSpec(
            num_scalar_prefetch=1,
            grid=grid,
            in_specs=[
                pl.BlockSpec((pl.Squeezed(), tm, tk), adj_map),
                pl.BlockSpec((pl.Squeezed(), tk, f_out_pad), xw_map),
            ],
            out_specs=pl.BlockSpec((tm, f_out_pad), lambda i, r, k, nz: (i, 0)),
        ),
        compiler_params=pltpu.CompilerParams(
            # dst-row tiles are independent -> megacore / v7x dual-TC split;
            # relation + reduction axes carry the resident output accumulator.
            dimension_semantics=("parallel", "arbitrary", "arbitrary"),
            vmem_limit_bytes=VMEM_LIMIT,
        ),
    )(nz_flat, adj_stack, xw_stack)


# ----------------------------------------------------------------------------
# Glue (plain JAX): feature split + grouping (grouping only used by reference)
# ----------------------------------------------------------------------------
def _split(x, vo):
    """Split along the last (feature) dimension into chunks of sizes `vo`."""
    outs = []
    off = 0
    for size in vo:
        outs.append(x[..., off:off + size])
        off += size
    return tuple(outs)


def group(values, aggr):
    if len(values) == 1:
        return values[0]
    stacked = jnp.stack(values, axis=0)
    if aggr == "sum":
        return jnp.sum(stacked, axis=0)
    if aggr == "mean":
        return jnp.mean(stacked, axis=0)
    if aggr == "max":
        return jnp.max(stacked, axis=0)
    raise ValueError(f"unsupported aggr: {aggr}")


def dense_adjacency(edge_index, n_dst, n_src):
    """edge_index: [2, E] with row 0 = source ids, row 1 = destination ids."""
    adj = jnp.zeros((n_dst, n_src), jnp.float32)
    return adj.at[edge_index[1], edge_index[0]].add(1.0)


# ----------------------------------------------------------------------------
# MyHeteroConv equivalent
# ----------------------------------------------------------------------------
class MyHeteroConvPallas:
    """Heterogeneous conv wrapper; each conv is {'w': [F_in,F_out], 'b': [F_out], 'vo': tuple}."""

    def __init__(self, convs, aggr="sum"):
        self.vo = {}
        for k, module in convs.items():
            dst = k[-1]
            if dst not in self.vo:
                self.vo[dst] = module["vo"]
            else:
                assert self.vo[dst] == module["vo"]
        self.convs = dict(convs)
        # TODO(synk): only 'sum'/'mean' group aggregation is fused in-kernel.
        assert aggr in ("sum", "mean")
        self.aggr = aggr

    def __call__(self, x_dict, edge_index_dict):
        out_dict_edge = {}  # synthetic linear convs emit no per-edge outputs

        # Group edge types by destination node type: one fused pallas_call per
        # destination (all its relations + the group-sum run in that call).
        by_dst = defaultdict(list)
        for edge_type, edge_index in edge_index_dict.items():
            if edge_type not in self.convs:
                continue
            by_dst[edge_type[-1]].append((edge_type, edge_index))

        out_dict = {}
        for dst, items in by_dst.items():
            n_dst = x_dict[dst].shape[0]
            f_out = self.convs[items[0][0]]["w"].shape[1]
            n_src_max = max(x_dict[et[0]].shape[0] for et, _ in items)
            n_rel = len(items)

            # Lane-dense output padding + bf16-sublane-aligned tiles.
            f_out_pad = _round_up(f_out, LANE)
            tk = min(TK_MAX, _round_up(n_src_max, LANE))
            n_src_pad = _round_up(n_src_max, tk)
            tm = min(TM_MAX, _round_up(n_dst, SUB_BF16))
            # v7x has 2 TensorCores; keep >= 2 tiles on the leading 'parallel'
            # grid axis whenever n_dst allows it.
            if _round_up(n_dst, SUB_BF16) // tm < 2 and tm > SUB_BF16:
                tm = _round_up(max(SUB_BF16, tm // 2), SUB_BF16)
            n_dst_pad = _round_up(n_dst, tm)

            # Build the padded bf16 adjacency stack directly (one scatter-add
            # per relation; edge counts <= 256 are exact in bf16) and the
            # hoisted per-relation XW = X_src @ W_r (f32 matmul, cast to bf16).
            # TODO(synk): cache adj_stack / nz table across calls for static graphs.
            adj_stack = jnp.zeros((n_rel, n_dst_pad, n_src_pad), jnp.bfloat16)
            xw_stack = jnp.zeros((n_rel, n_src_pad, f_out_pad), jnp.bfloat16)
            bias_sum = jnp.zeros((f_out,), jnp.float32)
            for r, (edge_type, edge_index) in enumerate(items):
                src = edge_type[0]
                mod = self.convs[edge_type]
                x_src = x_dict[src]
                adj_stack = adj_stack.at[r, edge_index[1], edge_index[0]].add(1.0)
                xw = jnp.dot(x_src.astype(jnp.float32),
                             mod["w"].astype(jnp.float32))
                xw_stack = xw_stack.at[r, :x_src.shape[0], :f_out].set(
                    xw.astype(jnp.bfloat16))
                bias_sum = bias_sum + mod["b"].astype(jnp.float32)

            # Per-(r, i, k) tile-nonzero table (scalar-prefetched into SMEM):
            # gates the in-kernel matmul and collapses zero-tile DMAs.
            n_i = n_dst_pad // tm
            n_k = n_src_pad // tk
            tiles = adj_stack.astype(jnp.float32).reshape(
                n_rel, n_i, tm, n_k, tk)
            nz_flat = (tiles.sum(axis=(2, 4)) > 0).astype(jnp.int32).reshape(-1)

            grouped = fused_dst_conv(nz_flat, adj_stack, xw_stack, tm, tk)
            # Bias is a per-dst-type constant row: one add outside the kernel
            # (sum_r (A_r X_r W_r + b_r) == kernel_out + sum_r b_r).
            grouped = grouped[:n_dst, :f_out] + bias_sum[None, :]
            if self.aggr == "mean":
                grouped = grouped / float(n_rel)
            out_dict[dst] = _split(grouped, self.vo[dst])

        # Original module returns (out_dict, out_dict_edge); out_dict_edge is
        # empty because the synthetic convs do not emit per-edge outputs.
        return out_dict, out_dict_edge


# ----------------------------------------------------------------------------
# Pure-JAX f32 reference (for correctness verification)
# ----------------------------------------------------------------------------
def reference_forward(x_dict, edge_index_dict, convs, vo_dict, aggr="sum"):
    out_lists = defaultdict(list)
    for edge_type, edge_index in edge_index_dict.items():
        src, rel, dst = edge_type
        mod = convs[edge_type]
        adj = dense_adjacency(edge_index, x_dict[dst].shape[0],
                              x_dict[src].shape[0])
        out = (adj @ x_dict[src]) @ mod["w"] + mod["b"].reshape(1, -1)
        out_lists[dst].append(out)
    out_dict = {}
    for key, value in out_lists.items():
        out_dict[key] = _split(group(value, aggr), vo_dict[key])
    return out_dict


# ----------------------------------------------------------------------------
# Main
# ----------------------------------------------------------------------------
if __name__ == "__main__":
    key = jax.random.PRNGKey(0)
    keys = jax.random.split(key, 12)

    # Node types: 'a' and 'b'
    N_A, N_B = 16, 24
    F_IN, F_OUT = 32, 32
    VO = (16, 16)  # feature-dim split sizes for every destination type

    x_dict = {
        "a": jax.random.normal(keys[0], (N_A, F_IN), jnp.float32),
        "b": jax.random.normal(keys[1], (N_B, F_IN), jnp.float32),
    }

    # Edge types: ('a','to','b'), ('b','to','b') [same dst -> tests fused sum
    # grouping], ('b','rev','a')
    E1, E2, E3 = 40, 32, 28
    edge_index_dict = {
        ("a", "to", "b"): jnp.stack([
            jax.random.randint(keys[2], (E1,), 0, N_A),
            jax.random.randint(keys[3], (E1,), 0, N_B)]),
        ("b", "to", "b"): jnp.stack([
            jax.random.randint(keys[4], (E2,), 0, N_B),
            jax.random.randint(keys[5], (E2,), 0, N_B)]),
        ("b", "rev", "a"): jnp.stack([
            jax.random.randint(keys[6], (E3,), 0, N_B),
            jax.random.randint(keys[7], (E3,), 0, N_A)]),
    }

    # Deterministic per-relation weights / biases
    wkeys = jax.random.split(keys[8], 6)
    convs = {
        ("a", "to", "b"): dict(
            w=0.1 * jax.random.normal(wkeys[0], (F_IN, F_OUT), jnp.float32),
            b=0.1 * jax.random.normal(wkeys[1], (F_OUT,), jnp.float32),
            vo=VO),
        ("b", "to", "b"): dict(
            w=0.1 * jax.random.normal(wkeys[2], (F_IN, F_OUT), jnp.float32),
            b=0.1 * jax.random.normal(wkeys[3], (F_OUT,), jnp.float32),
            vo=VO),
        ("b", "rev", "a"): dict(
            w=0.1 * jax.random.normal(wkeys[4], (F_IN, F_OUT), jnp.float32),
            b=0.1 * jax.random.normal(wkeys[5], (F_OUT,), jnp.float32),
            vo=VO),
    }

    model = MyHeteroConvPallas(convs, aggr="sum")
    out_dict, out_dict_edge = model(x_dict, edge_index_dict)
    jax.block_until_ready(out_dict)

    # Verify against a pure-JAX f32 reference (tolerance loosened for the
    # bf16 MXU operands; accumulation inside the kernel is f32).
    ref_dict = reference_forward(x_dict, edge_index_dict, convs,
                                 {"a": VO, "b": VO}, aggr="sum")
    for node_type in ref_dict:
        assert len(out_dict[node_type]) == len(ref_dict[node_type])
        for got, want in zip(out_dict[node_type], ref_dict[node_type]):
            np.testing.assert_allclose(np.asarray(got), np.asarray(want),
                                       rtol=5e-2, atol=5e-2)
    assert len(out_dict_edge) == 0

    print("KERNEL_OK")
</pallas_src>

<mosaic_0001>
module attributes {stable_mosaic.version = 11 : i64} {
  func.func @_hetero_dst_kernel(%arg0: i32, %arg1: i32, %arg2: i32, %arg3: memref<4xi32, #tpu.memory_space<smem>>, %arg4: memref<1x16x128xbf16, #tpu.memory_space<vmem>>, %arg5: memref<1x128x128xbf16, #tpu.memory_space<vmem>>, %arg6: memref<16x128xf32, #tpu.memory_space<vmem>>) attributes {dimension_semantics = [#tpu.dimension_semantics<parallel>, #tpu.dimension_semantics<arbitrary>, #tpu.dimension_semantics<arbitrary>], iteration_bounds = array<i64: 2, 2, 1>, scalar_prefetch = 1 : i64, scratch_operands = 0 : i64, tpu.core_type = #tpu.core_type<tc>, window_params = [{transform_indices = @transform_0, window_bounds = array<i64: 1, 16, 128>}, {transform_indices = @transform_1, window_bounds = array<i64: 1, 128, 128>}, {transform_indices = @transform_2, window_bounds = array<i64: 16, 128>}]} {
    %c0_i32 = arith.constant 0 : i32
    %0 = arith.cmpi eq, %arg1, %c0_i32 : i32
    %c0_i32_0 = arith.constant 0 : i32
    %1 = arith.cmpi eq, %arg2, %c0_i32_0 : i32
    %2 = arith.andi %0, %1 : i1
    %3 = arith.extui %2 : i1 to i32
    %c0_i32_1 = arith.constant 0 : i32
    %4 = arith.cmpi ne, %3, %c0_i32_1 : i32
    scf.if %4 {
      %cst = arith.constant 0.000000e+00 : f32
      %14 = vector.broadcast %cst : f32 to vector<16x128xf32>
      %c0 = arith.constant 0 : index
      %c0_4 = arith.constant 0 : index
      %15 = vector.load %arg6[%c0, %c0_4] : memref<16x128xf32, #tpu.memory_space<vmem>>, vector<16x128xf32>
      tpu.vector_store %arg6[%c0, %c0_4], %14 {strides = array<i32>} : memref<16x128xf32, #tpu.memory_space<vmem>>, vector<16x128xf32>,
    } else {
    }
    %c2_i32 = arith.constant 2 : i32
    %5 = arith.muli %arg1, %c2_i32 : i32
    %6 = arith.addi %5, %arg0 : i32
    %c1_i32 = arith.constant 1 : i32
    %7 = arith.muli %6, %c1_i32 : i32
    %8 = arith.addi %7, %arg2 : i32
    %9 = arith.index_cast %8 : i32 to index
    %10 = memref.load %arg3[%9] : memref<4xi32, #tpu.memory_space<smem>>
    %c0_i32_2 = arith.constant 0 : i32
    %11 = arith.cmpi sgt, %10, %c0_i32_2 : i32
    %12 = arith.extui %11 : i1 to i32
    %c0_i32_3 = arith.constant 0 : i32
    %13 = arith.cmpi ne, %12, %c0_i32_3 : i32
    scf.if %13 {
      %c0 = arith.constant 0 : index
      %c0_4 = arith.constant 0 : index
      %14 = vector.load %arg6[%c0, %c0_4] : memref<16x128xf32, #tpu.memory_space<vmem>>, vector<16x128xf32>
      %c0_5 = arith.constant 0 : index
      %c0_6 = arith.constant 0 : index
      %c0_7 = arith.constant 0 : index
      %15 = vector.load %arg4[%c0_5, %c0_6, %c0_7] : memref<1x16x128xbf16, #tpu.memory_space<vmem>>, vector<1x16x128xbf16>
      %16 = vector.shape_cast %15 : vector<1x16x128xbf16> to vector<16x128xbf16>
      %c0_8 = arith.constant 0 : index
      %c0_9 = arith.constant 0 : index
      %c0_10 = arith.constant 0 : index
      %17 = vector.load %arg5[%c0_8, %c0_9, %c0_10] : memref<1x128x128xbf16, #tpu.memory_space<vmem>>, vector<1x128x128xbf16>
      %18 = vector.shape_cast %17 : vector<1x128x128xbf16> to vector<128x128xbf16>
      %cst = arith.constant dense<0.000000e+00> : vector<16x128xf32>
      %19 = tpu.matmul %16, %18, %cst {dimension_numbers = #tpu.dot_dimension_numbers<[1], [0], [0], [1], [0, 0, 1, 1], [], []>} : vector<16x128xbf16>, vector<128x128xbf16>, vector<16x128xf32> -> vector<16x128xf32>
      %20 = arith.addf %14, %19 : vector<16x128xf32>
      %c0_11 = arith.constant 0 : index
      %c0_12 = arith.constant 0 : index
      %21 = vector.load %arg6[%c0_11, %c0_12] : memref<16x128xf32, #tpu.memory_space<vmem>>, vector<16x128xf32>
      tpu.vector_store %arg6[%c0_11, %c0_12], %20 {strides = array<i32>} : memref<16x128xf32, #tpu.memory_space<vmem>>, vector<16x128xf32>,
    } else {
    }
    return
  }
  func.func @transform_0(%arg0: i32, %arg1: i32, %arg2: i32, %arg3: memref<4xi32, #tpu.memory_space<smem>>) -> (i32, i32, i32) {
    %c2_i32 = arith.constant 2 : i32
    %0 = arith.muli %arg1, %c2_i32 : i32
    %1 = arith.addi %0, %arg0 : i32
    %c1_i32 = arith.constant 1 : i32
    %2 = arith.muli %1, %c1_i32 : i32
    %3 = arith.addi %2, %arg2 : i32
    %4 = arith.index_cast %3 : i32 to index
    %5 = memref.load %arg3[%4] : memref<4xi32, #tpu.memory_space<smem>>
    %6 = arith.muli %arg2, %5 : i32
    %c0_i32 = arith.constant 0 : i32
    return %arg1, %arg0, %6 : i32, i32, i32
  }
  func.func @transform_1(%arg0: i32, %arg1: i32, %arg2: i32, %arg3: memref<4xi32, #tpu.memory_space<smem>>) -> (i32, i32, i32) {
    %c2_i32 = arith.constant 2 : i32
    %0 = arith.muli %arg1, %c2_i32 : i32
    %1 = arith.addi %0, %arg0 : i32
    %c1_i32 = arith.constant 1 : i32
    %2 = arith.muli %1, %c1_i32 : i32
    %3 = arith.addi %2, %arg2 : i32
    %4 = arith.index_cast %3 : i32 to index
    %5 = memref.load %arg3[%4] : memref<4xi32, #tpu.memory_space<smem>>
    %6 = arith.muli %arg2, %5 : i32
    %c0_i32 = arith.constant 0 : i32
    %c0_i32_0 = arith.constant 0 : i32
    return %arg1, %6, %c0_i32 : i32, i32, i32
  }
  func.func @transform_2(%arg0: i32, %arg1: i32, %arg2: i32, %arg3: memref<4xi32, #tpu.memory_space<smem>>) -> (i32, i32) {
    %c0_i32 = arith.constant 0 : i32
    %c0_i32_0 = arith.constant 0 : i32
    return %arg0, %c0_i32 : i32, i32
  }
}

</mosaic_0001>

<llo_original>
// kernel: tpu_custom_call.1
$region0: #{tpu_custom_call.1}
  #allocation0 [shape = 'u32[]', space=smem, size = 0x4, offset = 0x4, fixed_abs, tag = 'smem constant byte address 0x4 - core index']
  #allocation1 [shape = 'u32[72,128]{1,0:T(1,128)}', space=vmem, size = 0x9000, scoped, tag = 'internal scratch']
  #allocation2 [shape = 's32[1]{0}', space=sflag, size = 0x4, scoped, tag = 'scoped memory for tpu_custom_call.1']
  #allocation3 [shape = 'u8[512]{0}', space=smem, size = 0x200, scoped, tag = 'prefetched SMEM operand 0']
  %s0 = inlined_call_operand.hbm [shape: s32[4], index: 0, kind: input, shape index: {}]
  %s1 = inlined_call_operand.hbm [shape: bf16[2,32,128], index: 1, kind: input, shape index: {}]
  %s2 = inlined_call_operand.hbm [shape: bf16[2,128,128], index: 2, kind: input, shape index: {}]
  %s3 = inlined_call_operand.hbm [shape: f32[32,128], index: 3, kind: output, shape index: {}]
  %s4 = sld [smem:[#allocation0]]
  $region57: #{tpu_custom_call.1} parent=0
    _
  %s6 = ssub.s32 1, %s4
  %s7 = scalar_select 0, %s6, %s4
  %s9 = sshll.u32 %s0, 4
  %s10 = int_to_ptr.hbm [resolvable:$true] %s9
  %12 = dma.hbm_to_smem %s10, 16, [#allocation3], [#allocation2]
  %14 = dma.done [#allocation2], 16
  %15 = sfence
  $region1: #{tpu_custom_call.1} parent=0
    #allocation4 [shape = 'u8[8192]{0}', space=vmem, size = 0x2000, scoped, tag = 'input window, operand 1']
    #allocation5 [shape = 's32[2]{0}', space=sflag, size = 0x8, scoped, tag = 'scoped memory for tpu_custom_call.1']
    #allocation6 [shape = 's32[2]{0}', space=sflag, size = 0x8, scoped, tag = 'scoped memory for tpu_custom_call.1']
    #allocation7 [shape = 'u8[65536]{0}', space=vmem, size = 0x10000, scoped, tag = 'input window, operand 2']
    #allocation8 [shape = 's32[2]{0}', space=sflag, size = 0x8, scoped, tag = 'scoped memory for tpu_custom_call.1']
    #allocation9 [shape = 'u8[16384]{0}', space=vmem, size = 0x4000, scoped, tag = 'output window, operand 0']
    %16 = vsyncpa [#allocation5], 0
    %s17 = scalar_lea.sflag [#allocation5], 1
    %18 = vsyncpa %s17, 0
    %19 = vsyncpa [#allocation8], 0
    %s20 = scalar_lea.sflag [#allocation8], 1
    %21 = vsyncpa %s20, 0
    %22 = vsyncpa [#allocation6], 0
    %s23 = scalar_lea.sflag [#allocation6], 1
    %24 = vsyncpa %s23, 0
    loop: start=0, step=1, limit=6
    $region2: #{tpu_custom_call.1} parent=1 // loop_pre_header
      _
    $region3: #{tpu_custom_call.1} parent=1 // loop_header
      %s26 = sphi 0, %s30
      %p27 = scmp.ge.s32.totalorder %s26, 6
      %s33 = sphi 0, %s52
      %s34 = sphi 0, %s48
      %s35 = sphi 0, %s44
      %s36 = sphi 0, %s33
      %s37 = sphi 0, %s34
      %s38 = sphi 0, %s35
      %s39 = sphi 0, %s36
      %s40 = sphi 0, %s37
      %s41 = sphi 0, %s38
      %s69 = sphi 0, %s71
      %s72 = sphi 0, %s69
      %s73 = sphi 0, %s72
      %s89 = sphi 0, %s73
      %s107 = sphi 0, %s109
      %s110 = sphi 0, %s107
      %s111 = sphi 0, %s110
      %s127 = sphi 0, %s111
      %s133 = sphi 0, %s135
      %s136 = sphi 0, %s133
      %s137 = sphi 0, %s136
      %s153 = sphi 0, %s137
    $region4: #{tpu_custom_call.1} parent=1 // loop_header_branch
      %29 = sbr.rel (%p27) target = $region8
    $region5: #{tpu_custom_call.1} parent=1 // loop_body
      %s31 = ssub.s32 %s26, 1
      %s32 = ssub.s32 %s26, 2
      %s42 = sadd.s32 1, %s35
      %p43 = scmp.ge.s32.totalorder %s42, 1
      %s44 = scalar_select %p43, 0, %s42
      %s45 = sadd.s32 1, %s34
      %s46 = scalar_select %p43, %s45, %s34
      %p47 = scmp.ge.s32.totalorder %s46, 2
      %s48 = scalar_select %p47, 0, %s46
      %s49 = sadd.s32 1, %s33
      %s50 = scalar_select %p47, %s49, %s33
      %p51 = scmp.ge.s32.totalorder %s50, 2
      %s52 = scalar_select %p51, 0, %s50
      %s53 = smul.u32 %s34, 2
      %s54 = sadd.s32 %s53, %s33
      %s55 = sadd.s32 %s54, %s35
      %s56 = sld [smem:[#allocation3 + %s55]]
      %s57 = smul.u32 %s35, %s56
      %s58 = smul.u32 %s48, 2
      %s59 = sadd.s32 %s58, %s52
      %s60 = sadd.s32 %s59, %s44
      %s61 = sld [smem:[#allocation3 + %s60]]
      %s62 = smul.u32 %s44, %s61
      %s63 = ssub.s32 %s34, %s48
      %s64 = ssub.s32 %s33, %s52
      %s65 = sor.u32 %s63, %s64
      %s66 = ssub.s32 %s57, %s62
      %s67 = sor.u32 %s65, %s66
      %p68 = scmp.eq.s32.totalorder %s67, 0
      %s70 = sadd.s32 %s69, 1
      %s71 = scalar_select %p68, %s69, %s70
      %p74 = pneg %p68
      %p75 = scmp.eq.s32.totalorder %s26, 3
      %p76 = por %p74, %p75
      %p77 = scmp.ne.s32.totalorder %s69, %s72
      %p78 = scmp.eq.s32.totalorder %s26, 0
      %p79 = por %p77, %p78
      %p80 = scmp.ne.s32.totalorder %s69, %s72
      %p81 = scmp.eq.s32.totalorder %s31, 3
      %p82 = por %p80, %p81
      %p83 = scmp.ne.s32.totalorder %s72, %s73
      %p84 = scmp.eq.s32.totalorder %s31, 0
      %p85 = por %p83, %p84
      %p86 = scmp.ne.s32.totalorder %s72, %s73
      %p87 = scmp.eq.s32.totalorder %s32, 3
      %p88 = por %p86, %p87
      %p90 = scmp.ne.s32.totalorder %s73, %s89
      %p91 = scmp.eq.s32.totalorder %s32, 0
      %p92 = por %p90, %p91
      %s93 = smul.u32 %s34, 2
      %s94 = sadd.s32 %s93, %s33
      %s95 = sadd.s32 %s94, %s35
      %s96 = sld [smem:[#allocation3 + %s95]]
      %s97 = smul.u32 %s35, %s96
      %s98 = smul.u32 %s48, 2
      %s99 = sadd.s32 %s98, %s52
      %s100 = sadd.s32 %s99, %s44
      %s101 = sld [smem:[#allocation3 + %s100]]
      %s102 = smul.u32 %s44, %s101
      %s103 = ssub.s32 %s34, %s48
      %s104 = ssub.s32 %s97, %s102
      %s105 = sor.u32 %s103, %s104
      %p106 = scmp.eq.s32.totalorder %s105, 0
      %s108 = sadd.s32 %s107, 1
      %s109 = scalar_select %p106, %s107, %s108
      %p112 = pneg %p106
      %p113 = scmp.eq.s32.totalorder %s26, 3
      %p114 = por %p112, %p113
      %p115 = scmp.ne.s32.totalorder %s107, %s110
      %p116 = scmp.eq.s32.totalorder %s26, 0
      %p117 = por %p115, %p116
      %p118 = scmp.ne.s32.totalorder %s107, %s110
      %p119 = scmp.eq.s32.totalorder %s31, 3
      %p120 = por %p118, %p119
      %p121 = scmp.ne.s32.totalorder %s110, %s111
      %p122 = scmp.eq.s32.totalorder %s31, 0
      %p123 = por %p121, %p122
      %p124 = scmp.ne.s32.totalorder %s110, %s111
      %p125 = scmp.eq.s32.totalorder %s32, 3
      %p126 = por %p124, %p125
      %p128 = scmp.ne.s32.totalorder %s111, %s127
      %p129 = scmp.eq.s32.totalorder %s32, 0
      %p130 = por %p128, %p129
      %s131 = ssub.s32 %s33, %s52
      %p132 = scmp.eq.s32.totalorder %s131, 0
      %s134 = sadd.s32 %s133, 1
      %s135 = scalar_select %p132, %s133, %s134
      %p138 = pneg %p132
      %p139 = scmp.eq.s32.totalorder %s26, 3
      %p140 = por %p138, %p139
      %p141 = scmp.ne.s32.totalorder %s133, %s136
      %p142 = scmp.eq.s32.totalorder %s26, 0
      %p143 = por %p141, %p142
      %p144 = scmp.ne.s32.totalorder %s133, %s136
      %p145 = scmp.eq.s32.totalorder %s31, 3
      %p146 = por %p144, %p145
      %p147 = scmp.ne.s32.totalorder %s136, %s137
      %p148 = scmp.eq.s32.totalorder %s31, 0
      %p149 = por %p147, %p148
      %p150 = scmp.ne.s32.totalorder %s136, %s137
      %p151 = scmp.eq.s32.totalorder %s32, 3
      %p152 = por %p150, %p151
      %p154 = scmp.ne.s32.totalorder %s137, %s153
      %p155 = scmp.eq.s32.totalorder %s32, 0
      %p156 = por %p154, %p155
      %p157 = scmp.le.s32.totalorder 1, %s26
      %p158 = scmp.lt.s32.totalorder %s26, 5
      %p159 = pnand %p157, %p158
      %p160 = pneg %p159
      // Predicated region
      $region9: #{tpu_custom_call.1} parent=5 // pred_check
        _
      $region10: #{tpu_custom_call.1} parent=5 // pred_check_branch
        %162 = sbr.rel (%p159) target = $region12
      $region11: #{tpu_custom_call.1} parent=5 // pred_region
        %s163 = ssub.s32 %s26, 1
      $region12: #{tpu_custom_call.1} parent=5 // pred_fallthru
        _
      %p164 = scmp.lt.s32.totalorder %s26, 4
      // Predicated region
      $region13: #{tpu_custom_call.1} parent=5 // pred_check
        %p165 = pneg %p164
      $region14: #{tpu_custom_call.1} parent=5 // pred_check_branch
        %167 = sbr.rel (%p165) target = $region16
      $region15: #{tpu_custom_call.1} parent=5 // pred_region
        // Predicated region
        $region17: #{tpu_custom_call.1} parent=15 // pred_check
          %p168 = pneg %p79
        $region18: #{tpu_custom_call.1} parent=15 // pred_check_branch
          %170 = sbr.rel (%p168) target = $region20
        $region19: #{tpu_custom_call.1} parent=15 // pred_region
          %s171 = sand.u32 %s69, 1
          %s172 = scalar_lea.sflag [#allocation5], %s171
          %s173 = sand.u32 %s69, 1
          %s174 = smul.addr %s173, 8
          %s175 = scalar_lea.vmem [#allocation4], %s174
          %s176 = smul.u32 %s34, 2
          %s177 = sadd.s32 %s176, %s33
          %s178 = sadd.s32 %s177, %s35
          %s179 = sld [smem:[#allocation3 + %s178]]
          %s180 = smul.u32 %s35, %s179
          %s181 = smul.u32 2, %s33
          %183 = vsyncadd %s172, 0
          %s184 = sadd.s32 %s180, %s181
          %s185 = smul.addr %s34, 4
          %s186 = sadd.s32 %s184, %s185
          %s187 = smul.addr %s186, 4
          %s188 = scalar_lea.hbm %s1, %s187
          %s189 = sshll.u32 %s188, 4
          %s190 = int_to_ptr.hbm [resolvable:$true] %s189
          %s191 = sshll.u32 %s175, 4
          %s192 = int_to_ptr.vmem [resolvable:$true] %s191
          %197 = dma.hbm_to_vmem [thread:$0]  %s190, 128, %s192, %s172, 64, 64, 4
        $region20: #{tpu_custom_call.1} parent=15 // pred_fallthru
          _
        // Predicated region
        $region21: #{tpu_custom_call.1} parent=15 // pred_check
          %p198 = pneg %p117
        $region22: #{tpu_custom_call.1} parent=15 // pred_check_branch
          %200 = sbr.rel (%p198) target = $region24
        $region23: #{tpu_custom_call.1} parent=15 // pred_region
          %s201 = sand.u32 %s107, 1
          %s202 = scalar_lea.sflag [#allocation8], %s201
          %s203 = sand.u32 %s107, 1
          %s204 = smul.addr %s203, 64
          %s205 = scalar_lea.vmem [#allocation7], %s204
          %s206 = smul.u32 %s34, 2
          %s207 = sadd.s32 %s206, %s33
          %s208 = sadd.s32 %s207, %s35
          %s209 = sld [smem:[#allocation3 + %s208]]
          %s210 = smul.u32 %s35, %s209
          %s211 = smul.u32 16, %s210
          %213 = vsyncadd %s202, 0
          %s214 = smul.addr %s34, 16
          %s215 = sadd.s32 %s211, %s214
          %s216 = smul.addr %s215, 4
          %s217 = scalar_lea.hbm %s2, %s216
          %s218 = sshll.u32 %s217, 4
          %s219 = int_to_ptr.hbm [resolvable:$true] %s218
          %s220 = sshll.u32 %s205, 4
          %s221 = int_to_ptr.vmem [resolvable:$true] %s220
          %226 = dma.hbm_to_vmem [thread:$0]  %s219, 1024, %s221, %s202, 64, 64, 4
        $region24: #{tpu_custom_call.1} parent=15 // pred_fallthru
          _
      $region16: #{tpu_custom_call.1} parent=5 // pred_fallthru
        _
      %p227 = scmp.le.s32.totalorder 1, %s26
      %p228 = scmp.lt.s32.totalorder %s26, 5
      %p229 = pnand %p227, %p228
      %p230 = pneg %p229
      // Predicated region
      $region25: #{tpu_custom_call.1} parent=5 // pred_check
        _
      $region26: #{tpu_custom_call.1} parent=5 // pred_check_branch
        %232 = sbr.rel (%p229) target = $region28
      $region27: #{tpu_custom_call.1} parent=5 // pred_region
        %s233 = ssub.s32 %s26, 1
        %s234 = sand.u32 %s72, 1
        %s235 = scalar_lea.sflag [#allocation5], %s234
        %s236 = sand.u32 %s72, 1
        %s237 = smul.addr %s236, 8
        %s238 = scalar_lea.vmem [#allocation4], %s237
        // Predicated region
        $region29: #{tpu_custom_call.1} parent=27 // pred_check
          %p239 = pneg %p85
        $region30: #{tpu_custom_call.1} parent=27 // pred_check_branch
          %241 = sbr.rel (%p239) target = $region32
        $region31: #{tpu_custom_call.1} parent=27 // pred_region
          %243 = dma.done %s235, 128
        $region32: #{tpu_custom_call.1} parent=27 // pred_fallthru
          _
        %s244 = sand.u32 %s110, 1
        %s245 = scalar_lea.sflag [#allocation8], %s244
        %s246 = sand.u32 %s110, 1
        %s247 = smul.addr %s246, 64
        %s248 = scalar_lea.vmem [#allocation7], %s247
        // Predicated region
        $region33: #{tpu_custom_call.1} parent=27 // pred_check
          %p249 = pneg %p123
        $region34: #{tpu_custom_call.1} parent=27 // pred_check_branch
          %251 = sbr.rel (%p249) target = $region36
        $region35: #{tpu_custom_call.1} parent=27 // pred_region
          %253 = dma.done %s245, 1024
        $region36: #{tpu_custom_call.1} parent=27 // pred_fallthru
          _
        %s254 = sand.u32 %s72, 1
        %s255 = scalar_lea.sflag [#allocation5], %s254
        %s256 = sand.u32 %s72, 1
        %s257 = smul.addr %s256, 8
        %s258 = scalar_lea.vmem [#allocation4], %s257
        %p259 = pneg %p85
        %p260 = pneg %p82
        %s261 = sand.u32 %s110, 1
        %s262 = scalar_lea.sflag [#allocation8], %s261
        %s263 = sand.u32 %s110, 1
        %s264 = smul.addr %s263, 64
        %s265 = scalar_lea.vmem [#allocation7], %s264
        %p266 = pneg %p123
        %p267 = pneg %p120
        %p268 = pneg %p149
        %p269 = pneg %p146
        %s270 = sand.u32 %s136, 1
        %s271 = scalar_lea.sflag [#allocation6], %s270
        %s272 = sand.u32 %s136, 1
        %s273 = smul.addr %s272, 16
        %s274 = scalar_lea.vmem [#allocation9], %s273
        %s275 = smul.u32 %s37, 2
        %s276 = sadd.s32 %s275, %s36
        %s277 = sadd.s32 %s276, %s38
        %s278 = sld [smem:[#allocation3 + %s277]]
        %s279 = smul.u32 %s38, %s278
        %s280 = smul.u32 2, %s36
        %s281 = smul.u32 %s37, 2
        %s282 = sadd.s32 %s281, %s36
        %s283 = sadd.s32 %s282, %s38
        %s284 = sld [smem:[#allocation3 + %s283]]
        %s285 = smul.u32 %s38, %s284
        %s286 = smul.u32 16, %s285
        %s287 = smul.u32 2, %s36
        %p288 = scmp.eq.s32.totalorder %s37, 0
        %p289 = scmp.eq.s32.totalorder %s38, 0
        %p290 = pnand %p288, %p289
        %p291 = pneg %p290
        // Predicated region
        $region37: #{tpu_custom_call.1} parent=27 // pred_check
          _
        $region38: #{tpu_custom_call.1} parent=27 // pred_check_branch
          %293 = sbr.rel (%p290) target = $region40
        $region39: #{tpu_custom_call.1} parent=27 // pred_region
          %294 = vst [vmem:[%s274] sm:$0xff] 0.0
          %295 = vst [vmem:[%s274 + $0x8] sm:$0xff] 0.0
        $region40: #{tpu_custom_call.1} parent=27 // pred_fallthru
          _
        %s296 = smul.u32 %s37, 2
        %s297 = sadd.s32 %s296, %s36
        %s298 = sadd.s32 %s297, %s38
        %s299 = sld [smem:[#allocation3 + %s298]]
        %p300 = scmp.gt.s32.totalorder %s299, 0
        // Predicated region
        $region41: #{tpu_custom_call.1} parent=27 // pred_check
          %p301 = pneg %p300
        $region42: #{tpu_custom_call.1} parent=27 // pred_check_branch
          %303 = sbr.rel (%p301) target = $region44
        $region43: #{tpu_custom_call.1} parent=27 // pred_region
          %v304 = vld [vmem:[%s274] sm:$0xff]
          %v305 = vld [vmem:[%s274 + $0x8] sm:$0xff]
          %v306 = vld [vmem:[%s238] sm:$0xf]
          %v307 = vld [vmem:[%s238 + $0x4] sm:$0xf]
          %v308 = vld [vmem:[%s248] sm:$0xf]
          %v309 = vld [vmem:[%s248 + $0x4] sm:$0xf]
          %v310 = vld [vmem:[%s248 + $0x8] sm:$0xf]
          %v311 = vld [vmem:[%s248 + $0xc] sm:$0xf]
          %v312 = vld [vmem:[%s248 + $0x10] sm:$0xf]
          %v313 = vld [vmem:[%s248 + $0x14] sm:$0xf]
          %v314 = vld [vmem:[%s248 + $0x18] sm:$0xf]
          %v315 = vld [vmem:[%s248 + $0x1c] sm:$0xf]
          %v316 = vld [vmem:[%s248 + $0x20] sm:$0xf]
          %v317 = vld [vmem:[%s248 + $0x24] sm:$0xf]
          %v318 = vld [vmem:[%s248 + $0x28] sm:$0xf]
          %v319 = vld [vmem:[%s248 + $0x2c] sm:$0xf]
          %v320 = vld [vmem:[%s248 + $0x30] sm:$0xf]
          %v321 = vld [vmem:[%s248 + $0x34] sm:$0xf]
          %v322 = vld [vmem:[%s248 + $0x38] sm:$0xf]
          %v323 = vld [vmem:[%s248 + $0x3c] sm:$0xf]
          %v326 = vunpack.c.l.b16 %v306
          %v327 = vunpack.c.l.b16 %v307
          %v328 = vpack.c.b16 %v327, %v326
          %v346 = vunpack.c.l.b16 %v308
          %v347 = vunpack.c.l.b16 %v309
          %v348 = vunpack.c.l.b16 %v310
          %v349 = vunpack.c.l.b16 %v311
          %v350 = vunpack.c.l.b16 %v312
          %v351 = vunpack.c.l.b16 %v313
          %v352 = vunpack.c.l.b16 %v314
          %v353 = vunpack.c.l.b16 %v315
          %v354 = vunpack.c.l.b16 %v316
          %v355 = vunpack.c.l.b16 %v317
          %v356 = vunpack.c.l.b16 %v318
          %v357 = vunpack.c.l.b16 %v319
          %v358 = vunpack.c.l.b16 %v320
          %v359 = vunpack.c.l.b16 %v321
          %v360 = vunpack.c.l.b16 %v322
          %v361 = vunpack.c.l.b16 %v323
          %v362 = vpack.c.b16 %v347, %v346
          %v363 = vpack.c.b16 %v349, %v348
          %v364 = vpack.c.b16 %v351, %v350
          %v365 = vpack.c.b16 %v353, %v352
          %v366 = vpack.c.b16 %v355, %v354
          %v367 = vpack.c.b16 %v357, %v356
          %v368 = vpack.c.b16 %v359, %v358
          %v369 = vpack.c.b16 %v361, %v360
          %378 = vmatpush.bf16.msra.mxu0 %v369
          %379 = vmatpush.bf16.msra.mxu0 %v368
          %380 = vmatpush.bf16.msra.mxu0 %v367
          %381 = vmatpush.bf16.msra.mxu0 %v366
          %382 = vmatpush.bf16.msra.mxu0 %v365
          %383 = vmatpush.bf16.msra.mxu0 %v364
          %384 = vmatpush.bf16.msra.mxu0 %v363
          %385 = vmatpush.bf16.msra.mxu0 %v362
          %386 = vmatmul.bf16.gmra.mxu0 %v328
          %v387 = vpop.f32.mrf.mxu0
          %v388 = vadd.f32 0.0, %v387
          %v389 = vpop.f32.mrf.mxu0
          %v390 = vadd.f32 0.0, %v389
          %391 = vdwg.mxu0
          %v392 = vadd.f32 %v304, %v388
          %v393 = vadd.f32 %v305, %v390
          %394 = vst [vmem:[%s274] sm:$0xff] %v392
          %395 = vst [vmem:[%s274 + $0x8] sm:$0xff] %v393
        $region44: #{tpu_custom_call.1} parent=27 // pred_fallthru
          _
        %s396 = sand.u32 %s136, 1
        %s397 = scalar_lea.sflag [#allocation6], %s396
        %s398 = sand.u32 %s136, 1
        %s399 = smul.addr %s398, 16
        %s400 = scalar_lea.vmem [#allocation9], %s399
        // Predicated region
        $region45: #{tpu_custom_call.1} parent=27 // pred_check
          %p401 = pneg %p146
        $region46: #{tpu_custom_call.1} parent=27 // pred_check_branch
          %403 = sbr.rel (%p401) target = $region48
        $region47: #{tpu_custom_call.1} parent=27 // pred_region
          %s404 = smul.u32 2, %s36
          %406 = vsyncadd %s397, 0
          %s407 = smul.addr %s404, 8
          %s408 = scalar_lea.hbm %s3, %s407
          %s409 = sshll.u32 %s400, 4
          %s410 = int_to_ptr.vmem [resolvable:$true] %s409
          %s411 = sshll.u32 %s408, 4
          %s412 = int_to_ptr.hbm [resolvable:$true] %s411
          %417 = dma.vmem_to_hbm [thread:$0]  %s410, 256, %s412, %s397, 128, 128, 8
        $region48: #{tpu_custom_call.1} parent=27 // pred_fallthru
          _
      $region28: #{tpu_custom_call.1} parent=5 // pred_fallthru
        _
      %p418 = scmp.le.s32.totalorder 2, %s26
      // Predicated region
      $region49: #{tpu_custom_call.1} parent=5 // pred_check
        %p419 = pneg %p418
      $region50: #{tpu_custom_call.1} parent=5 // pred_check_branch
        %421 = sbr.rel (%p419) target = $region52
      $region51: #{tpu_custom_call.1} parent=5 // pred_region
        %s422 = ssub.s32 %s26, 2
        // Predicated region
        $region53: #{tpu_custom_call.1} parent=51 // pred_check
          %p423 = pneg %p152
        $region54: #{tpu_custom_call.1} parent=51 // pred_check_branch
          %425 = sbr.rel (%p423) target = $region56
        $region55: #{tpu_custom_call.1} parent=51 // pred_region
          %s426 = sand.u32 %s137, 1
          %s427 = scalar_lea.sflag [#allocation6], %s426
          %s428 = sand.u32 %s137, 1
          %s429 = smul.addr %s428, 16
          %s430 = scalar_lea.vmem [#allocation9], %s429
          %432 = dma.done %s427, 256
        $region56: #{tpu_custom_call.1} parent=51 // pred_fallthru
          _
      $region52: #{tpu_custom_call.1} parent=5 // pred_fallthru
        _
    $region6: #{tpu_custom_call.1} parent=1 // loop_footer
      %s30 = sadd.s32 1, %s26
    $region7: #{tpu_custom_call.1} parent=1 // loop_footer_branch
      %25 = sbr.rel target = $region3
    $region8: #{tpu_custom_call.1} parent=1 // loop_exit
      _
    %433 = vsyncpa [#allocation5], 1
    %s434 = scalar_lea.sflag [#allocation5], 1
    %435 = vsyncpa %s434, 1
    %436 = vsyncpa [#allocation8], 1
    %s437 = scalar_lea.sflag [#allocation8], 1
    %438 = vsyncpa %s437, 1
    %439 = vsyncpa [#allocation6], 1
    %s440 = scalar_lea.sflag [#allocation6], 1
    %441 = vsyncpa %s440, 1

</llo_original>
